<compile_context>
chip_gen: v5e
topology: v5e:2x2
jax: 0.10.0
libtpu: 0.0.40
codegen_flags: <defaults>
</compile_context>

<pallas_src>
import numpy as np
import jax
import jax.numpy as jnp
from jax.experimental import pallas as pl
from jax.experimental.pallas import tpu as pltpu


# ---------------------------------------------------------------------------
# Fused ResNetUnit kernel (one batch row per grid step)
# ---------------------------------------------------------------------------

def _make_resnet_unit_kernel(strides, dim_match):
    st1, st2 = strides
    sc_stride = st1 * st2

    def _tap(x, stride, offset, l_out):
        # result[r, :] = x[stride*r + offset, :]   (zero row when out of range)
        # Exact 0/1 selection matmul: no unaligned sublane slices, always lowers.
        if stride == 1 and offset == 0:
            return x
        l_in = x.shape[0]
        r = jax.lax.broadcasted_iota(jnp.int32, (l_out, l_in), 0)
        c = jax.lax.broadcasted_iota(jnp.int32, (l_out, l_in), 1)
        sel = (c == stride * r + offset).astype(jnp.float32)
        return jnp.dot(sel, x, preferred_element_type=jnp.float32)

    def _conv3_bias_bn_relu(x, w_ref, b_ref, s_ref, t_ref, stride):
        # Conv1d(k=3, pad=1, stride) + bias + BN affine (inference) + ReLU on an (L, Cin)
        # slab.  w_ref: (3, Cin, Cout) bf16; tap k multiplies x[stride*l + k - 1].
        l_out = (x.shape[0] - 1) // stride + 1
        acc = None
        for k in range(3):                       # 3 accumulated bf16 x bf16 -> f32 MXU matmuls
            tap = _tap(x, stride, k - 1, l_out)
            part = jnp.dot(tap.astype(jnp.bfloat16), w_ref[k],
                           preferred_element_type=jnp.float32)
            acc = part if acc is None else acc + part
        y = acc + b_ref[...]                     # conv bias            (f32 epilogue)
        y = y * s_ref[...] + t_ref[...]          # BN affine (running stats folded)
        return jnp.maximum(y, 0.0)               # ReLU

    def kernel(x_ref, w1_ref, b1_ref, s1_ref, t1_ref,
               w2_ref, b2_ref, s2_ref, t2_ref, *rest):
        if dim_match:
            (o_ref,) = rest
            wsc_ref = None
        else:
            wsc_ref, o_ref = rest

        x = x_ref[0]                             # (L, Cin): one batch row, f32
        h = _conv3_bias_bn_relu(x, w1_ref, b1_ref, s1_ref, t1_ref, st1)
        h = _conv3_bias_bn_relu(h, w2_ref, b2_ref, s2_ref, t2_ref, st2)

        if dim_match:
            res = x                              # identity shortcut
        else:                                    # 1x1 shortcut conv (stride st1*st2, no bias)
            l_sc = (x.shape[0] - 1) // sc_stride + 1
            ident = _tap(x, sc_stride, 0, l_sc)
            res = jnp.dot(ident.astype(jnp.bfloat16), wsc_ref[...],
                          preferred_element_type=jnp.float32)

        o_ref[0] = (res + h).astype(o_ref.dtype)  # residual added AFTER the second ReLU

    return kernel


def _const_spec(arr):
    # Weight / per-channel-affine operand: whole array resident in VMEM, same block for
    # every grid step.
    return pl.BlockSpec(arr.shape, lambda b, _nd=arr.ndim: (0,) * _nd)


def resnet_unit_forward(params, x_ncl):
    """x_ncl: (N, C_in, L), NCL exactly like PyTorch. Returns (N, C_out, L_out)."""
    p = params
    st1, st2 = p['strides']
    dim_match = p['dim_match']

    x_nlc = jnp.transpose(x_ncl, (0, 2, 1))              # glue: NCL -> NLC
    N, L, Cin = x_nlc.shape
    Cout = p['w1'].shape[2]
    L1 = (L - 1) // st1 + 1
    L2 = (L1 - 1) // st2 + 1
    if not dim_match:
        L_sc = (L - 1) // (st1 * st2) + 1
        assert L_sc == L2, "shortcut / main-path length mismatch"

    operands = [x_nlc,
                p['w1'].astype(jnp.bfloat16), p['b1'], p['s1'], p['t1'],
                p['w2'].astype(jnp.bfloat16), p['b2'], p['s2'], p['t2']]
    if not dim_match:
        operands.append(p['w_sc'].astype(jnp.bfloat16))

    in_specs = [pl.BlockSpec((1, L, Cin), lambda b: (b, 0, 0))]
    in_specs += [_const_spec(o) for o in operands[1:]]

    flops = 2 * N * L1 * 3 * Cin * Cout + 2 * N * L2 * 3 * Cout * Cout
    if not dim_match:
        flops += 2 * N * L2 * Cin * Cout
    bytes_accessed = sum(int(np.prod(o.shape)) * o.dtype.itemsize for o in operands)
    bytes_accessed += N * L2 * Cout * 4

    kernel = _make_resnet_unit_kernel((st1, st2), dim_match)

    out_nlc = pl.pallas_call(
        kernel,
        out_shape=jax.ShapeDtypeStruct((N, L2, Cout), jnp.float32),
        grid=(N,),
        in_specs=in_specs,
        out_specs=pl.BlockSpec((1, L2, Cout), lambda b: (b, 0, 0)),
        compiler_params=pltpu.CompilerParams(dimension_semantics=("parallel",)),
        cost_estimate=pl.CostEstimate(flops=int(flops), transcendentals=0,
                                      bytes_accessed=int(bytes_accessed)),
    )(*operands)

    return jnp.transpose(out_nlc, (0, 2, 1))             # glue: NLC -> NCL (PyTorch layout)


# ---------------------------------------------------------------------------
# Parameter init (deterministic, synthetic) — BN running stats folded to affine
# ---------------------------------------------------------------------------

def init_unit_params(key, in_channels, out_channels, strides):
    keys = iter(jax.random.split(key, 32))
    nk = lambda: next(keys)

    def conv_w(cin, cout, k):
        std = 1.0 / np.sqrt(cin * k)
        return jax.random.normal(nk(), (k, cin, cout), jnp.float32) * std

    def bias(c):
        return jax.random.normal(nk(), (1, c), jnp.float32) * 0.05

    def bn_affine(c):
        gamma = 1.0 + 0.1 * jax.random.normal(nk(), (c,), jnp.float32)
        beta = 0.1 * jax.random.normal(nk(), (c,), jnp.float32)
        rmean = 0.1 * jax.random.normal(nk(), (c,), jnp.float32)
        rvar = jax.random.uniform(nk(), (c,), jnp.float32, 0.5, 1.5)
        scale = gamma * jax.lax.rsqrt(rvar + 1e-5)
        shift = beta - rmean * scale
        return scale.reshape(1, c), shift.reshape(1, c)

    dim_match = (in_channels == out_channels) and tuple(strides) == (1, 1)
    p = dict(strides=tuple(strides), dim_match=dim_match,
             w1=conv_w(in_channels, out_channels, 3), b1=bias(out_channels),
             w2=conv_w(out_channels, out_channels, 3), b2=bias(out_channels))
    p['s1'], p['t1'] = bn_affine(out_channels)
    p['s2'], p['t2'] = bn_affine(out_channels)
    if not dim_match:
        p['w_sc'] = (jax.random.normal(nk(), (in_channels, out_channels), jnp.float32)
                     / np.sqrt(in_channels))
    return p


# ---------------------------------------------------------------------------
# Pure-JAX reference (NCL, lax.conv) used to validate the Pallas path.
# Mirrors the kernel's MXU precision: bf16 conv/matmul inputs, f32 accumulation,
# f32 elementwise epilogues.
# ---------------------------------------------------------------------------

def _ref_conv1d(x_ncl, w_kio, b, stride, pad):
    w = jnp.transpose(w_kio, (2, 1, 0)).astype(jnp.bfloat16)     # (K,Cin,Cout)->(Cout,Cin,K)
    y = jax.lax.conv_general_dilated(x_ncl.astype(jnp.bfloat16), w, (stride,),
                                     ((pad, pad),),
                                     dimension_numbers=('NCH', 'OIH', 'NCH'),
                                     preferred_element_type=jnp.float32)
    if b is not None:
        y = y + b.reshape(1, -1, 1)
    return y


def _ref_bn(x, s, t):
    return x * s.reshape(1, -1, 1) + t.reshape(1, -1, 1)


def ref_unit_forward(params, x_ncl):
    p = params
    st1, st2 = p['strides']
    h = jax.nn.relu(_ref_bn(_ref_conv1d(x_ncl, p['w1'], p['b1'], st1, 1), p['s1'], p['t1']))
    h = jax.nn.relu(_ref_bn(_ref_conv1d(h, p['w2'], p['b2'], st2, 1), p['s2'], p['t2']))
    if p['dim_match']:
        return x_ncl + h
    w_sc = jnp.transpose(p['w_sc']).astype(jnp.bfloat16)[:, :, None]  # (Cout, Cin, 1)
    sc = jax.lax.conv_general_dilated(x_ncl.astype(jnp.bfloat16), w_sc,
                                      (st1 * st2,), ((0, 0),),
                                      dimension_numbers=('NCH', 'OIH', 'NCH'),
                                      preferred_element_type=jnp.float32)
    return sc + h


# ---------------------------------------------------------------------------

if __name__ == "__main__":
    key = jax.random.PRNGKey(0)

    # Small shapes consistent with the module: batch=2, seq length=16.
    cases = [
        # (name, in_channels, out_channels, strides)
        ("downsample", 4, 8, (2, 1)),   # dim_match=False: 1x1 stride-2 shortcut conv
        ("dim_match",  8, 8, (1, 1)),   # dim_match=True : identity shortcut
    ]
    N, L = 2, 16
    for name, cin, cout, strides in cases:
        key, kp, kx = jax.random.split(key, 3)
        params = init_unit_params(kp, cin, cout, strides)
        x = jax.random.normal(kx, (N, cin, L), jnp.float32)        # NCL like PyTorch

        out = jax.block_until_ready(resnet_unit_forward(params, x))
        ref = jax.block_until_ready(ref_unit_forward(params, x))
        assert out.shape == ref.shape, (name, out.shape, ref.shape)
        # bf16-on-MXU / f32-accumulate in both paths; tolerance covers accumulation order.
        np.testing.assert_allclose(np.asarray(out), np.asarray(ref),
                                   rtol=1e-2, atol=1e-2)

    print("KERNEL_OK")
</pallas_src>

<mosaic_0001>
module attributes {stable_mosaic.version = 11 : i64} {
  func.func @kernel(%arg0: i32, %arg1: memref<1x16x4xf32, #tpu.memory_space<vmem>>, %arg2: memref<3x4x8xbf16, #tpu.memory_space<vmem>>, %arg3: memref<1x8xf32, #tpu.memory_space<vmem>>, %arg4: memref<1x8xf32, #tpu.memory_space<vmem>>, %arg5: memref<1x8xf32, #tpu.memory_space<vmem>>, %arg6: memref<3x8x8xbf16, #tpu.memory_space<vmem>>, %arg7: memref<1x8xf32, #tpu.memory_space<vmem>>, %arg8: memref<1x8xf32, #tpu.memory_space<vmem>>, %arg9: memref<1x8xf32, #tpu.memory_space<vmem>>, %arg10: memref<4x8xbf16, #tpu.memory_space<vmem>>, %arg11: memref<1x8x8xf32, #tpu.memory_space<vmem>>) attributes {dimension_semantics = [#tpu.dimension_semantics<parallel>], iteration_bounds = array<i64: 2>, scalar_prefetch = 0 : i64, scratch_operands = 0 : i64, tpu.core_type = #tpu.core_type<tc>, window_params = [{transform_indices = @transform_0, window_bounds = array<i64: 1, 16, 4>}, {pipeline_mode = #tpu.pipeline_mode<synchronous>, transform_indices = @transform_1, window_bounds = array<i64: 3, 4, 8>}, {pipeline_mode = #tpu.pipeline_mode<synchronous>, transform_indices = @transform_2, window_bounds = array<i64: 1, 8>}, {pipeline_mode = #tpu.pipeline_mode<synchronous>, transform_indices = @transform_3, window_bounds = array<i64: 1, 8>}, {pipeline_mode = #tpu.pipeline_mode<synchronous>, transform_indices = @transform_4, window_bounds = array<i64: 1, 8>}, {pipeline_mode = #tpu.pipeline_mode<synchronous>, transform_indices = @transform_5, window_bounds = array<i64: 3, 8, 8>}, {pipeline_mode = #tpu.pipeline_mode<synchronous>, transform_indices = @transform_6, window_bounds = array<i64: 1, 8>}, {pipeline_mode = #tpu.pipeline_mode<synchronous>, transform_indices = @transform_7, window_bounds = array<i64: 1, 8>}, {pipeline_mode = #tpu.pipeline_mode<synchronous>, transform_indices = @transform_8, window_bounds = array<i64: 1, 8>}, {pipeline_mode = #tpu.pipeline_mode<synchronous>, transform_indices = @transform_9, window_bounds = array<i64: 4, 8>}, {transform_indices = @transform_10, window_bounds = array<i64: 1, 8, 8>}]} {
    %c0 = arith.constant 0 : index
    %c0_0 = arith.constant 0 : index
    %c0_1 = arith.constant 0 : index
    %0 = vector.load %arg1[%c0, %c0_0, %c0_1] : memref<1x16x4xf32, #tpu.memory_space<vmem>>, vector<1x16x4xf32>
    %1 = vector.shape_cast %0 : vector<1x16x4xf32> to vector<16x4xf32>
    %2 = tpu.iota {dimensions = array<i32: 0>} : vector<8x16xi32>
    %3 = tpu.iota {dimensions = array<i32: 1>} : vector<8x16xi32>
    %c2_i32 = arith.constant 2 : i32
    %4 = vector.broadcast %c2_i32 : i32 to vector<8x16xi32>
    %5 = arith.muli %4, %2 : vector<8x16xi32>
    %c-1_i32 = arith.constant -1 : i32
    %6 = vector.broadcast %c-1_i32 : i32 to vector<8x16xi32>
    %7 = arith.addi %5, %6 : vector<8x16xi32>
    %8 = arith.cmpi eq, %3, %7 : vector<8x16xi32>
    %9 = arith.extui %8 : vector<8x16xi1> to vector<8x16xi32>
    %10 = arith.sitofp %9 : vector<8x16xi32> to vector<8x16xf32>
    %cst = arith.constant dense<0.000000e+00> : vector<8x4xf32>
    %11 = tpu.matmul %10, %1, %cst {dimension_numbers = #tpu.dot_dimension_numbers<[1], [0], [0], [1], [0, 0, 1, 1], [], []>} : vector<8x16xf32>, vector<16x4xf32>, vector<8x4xf32> -> vector<8x4xf32>
    %12 = arith.truncf %11 : vector<8x4xf32> to vector<8x4xbf16>
    %c0_2 = arith.constant 0 : index
    %c0_3 = arith.constant 0 : index
    %c0_4 = arith.constant 0 : index
    %13 = vector.load %arg2[%c0_2, %c0_3, %c0_4] : memref<3x4x8xbf16, #tpu.memory_space<vmem>>, vector<1x4x8xbf16>
    %14 = vector.shape_cast %13 : vector<1x4x8xbf16> to vector<4x8xbf16>
    %cst_5 = arith.constant dense<0.000000e+00> : vector<8x8xf32>
    %15 = tpu.matmul %12, %14, %cst_5 {dimension_numbers = #tpu.dot_dimension_numbers<[1], [0], [0], [1], [0, 0, 1, 1], [], []>} : vector<8x4xbf16>, vector<4x8xbf16>, vector<8x8xf32> -> vector<8x8xf32>
    %16 = tpu.iota {dimensions = array<i32: 0>} : vector<8x16xi32>
    %17 = tpu.iota {dimensions = array<i32: 1>} : vector<8x16xi32>
    %c2_i32_6 = arith.constant 2 : i32
    %18 = vector.broadcast %c2_i32_6 : i32 to vector<8x16xi32>
    %19 = arith.muli %18, %16 : vector<8x16xi32>
    %c0_i32 = arith.constant 0 : i32
    %20 = vector.broadcast %c0_i32 : i32 to vector<8x16xi32>
    %21 = arith.addi %19, %20 : vector<8x16xi32>
    %22 = arith.cmpi eq, %17, %21 : vector<8x16xi32>
    %23 = arith.extui %22 : vector<8x16xi1> to vector<8x16xi32>
    %24 = arith.sitofp %23 : vector<8x16xi32> to vector<8x16xf32>
    %cst_7 = arith.constant dense<0.000000e+00> : vector<8x4xf32>
    %25 = tpu.matmul %24, %1, %cst_7 {dimension_numbers = #tpu.dot_dimension_numbers<[1], [0], [0], [1], [0, 0, 1, 1], [], []>} : vector<8x16xf32>, vector<16x4xf32>, vector<8x4xf32> -> vector<8x4xf32>
    %26 = arith.truncf %25 : vector<8x4xf32> to vector<8x4xbf16>
    %c1 = arith.constant 1 : index
    %c0_8 = arith.constant 0 : index
    %c0_9 = arith.constant 0 : index
    %27 = vector.load %arg2[%c1, %c0_8, %c0_9] : memref<3x4x8xbf16, #tpu.memory_space<vmem>>, vector<1x4x8xbf16>
    %28 = vector.shape_cast %27 : vector<1x4x8xbf16> to vector<4x8xbf16>
    %cst_10 = arith.constant dense<0.000000e+00> : vector<8x8xf32>
    %29 = tpu.matmul %26, %28, %cst_10 {dimension_numbers = #tpu.dot_dimension_numbers<[1], [0], [0], [1], [0, 0, 1, 1], [], []>} : vector<8x4xbf16>, vector<4x8xbf16>, vector<8x8xf32> -> vector<8x8xf32>
    %30 = arith.addf %15, %29 : vector<8x8xf32>
    %31 = tpu.iota {dimensions = array<i32: 0>} : vector<8x16xi32>
    %32 = tpu.iota {dimensions = array<i32: 1>} : vector<8x16xi32>
    %c2_i32_11 = arith.constant 2 : i32
    %33 = vector.broadcast %c2_i32_11 : i32 to vector<8x16xi32>
    %34 = arith.muli %33, %31 : vector<8x16xi32>
    %c1_i32 = arith.constant 1 : i32
    %35 = vector.broadcast %c1_i32 : i32 to vector<8x16xi32>
    %36 = arith.addi %34, %35 : vector<8x16xi32>
    %37 = arith.cmpi eq, %32, %36 : vector<8x16xi32>
    %38 = arith.extui %37 : vector<8x16xi1> to vector<8x16xi32>
    %39 = arith.sitofp %38 : vector<8x16xi32> to vector<8x16xf32>
    %cst_12 = arith.constant dense<0.000000e+00> : vector<8x4xf32>
    %40 = tpu.matmul %39, %1, %cst_12 {dimension_numbers = #tpu.dot_dimension_numbers<[1], [0], [0], [1], [0, 0, 1, 1], [], []>} : vector<8x16xf32>, vector<16x4xf32>, vector<8x4xf32> -> vector<8x4xf32>
    %41 = arith.truncf %40 : vector<8x4xf32> to vector<8x4xbf16>
    %c2 = arith.constant 2 : index
    %c0_13 = arith.constant 0 : index
    %c0_14 = arith.constant 0 : index
    %42 = vector.load %arg2[%c2, %c0_13, %c0_14] : memref<3x4x8xbf16, #tpu.memory_space<vmem>>, vector<1x4x8xbf16>
    %43 = vector.shape_cast %42 : vector<1x4x8xbf16> to vector<4x8xbf16>
    %cst_15 = arith.constant dense<0.000000e+00> : vector<8x8xf32>
    %44 = tpu.matmul %41, %43, %cst_15 {dimension_numbers = #tpu.dot_dimension_numbers<[1], [0], [0], [1], [0, 0, 1, 1], [], []>} : vector<8x4xbf16>, vector<4x8xbf16>, vector<8x8xf32> -> vector<8x8xf32>
    %45 = arith.addf %30, %44 : vector<8x8xf32>
    %c0_16 = arith.constant 0 : index
    %c0_17 = arith.constant 0 : index
    %46 = vector.load %arg3[%c0_16, %c0_17] : memref<1x8xf32, #tpu.memory_space<vmem>>, vector<1x8xf32>
    %47 = vector.broadcast %46 : vector<1x8xf32> to vector<8x8xf32>
    %48 = arith.addf %45, %47 : vector<8x8xf32>
    %c0_18 = arith.constant 0 : index
    %c0_19 = arith.constant 0 : index
    %49 = vector.load %arg4[%c0_18, %c0_19] : memref<1x8xf32, #tpu.memory_space<vmem>>, vector<1x8xf32>
    %50 = vector.broadcast %49 : vector<1x8xf32> to vector<8x8xf32>
    %51 = arith.mulf %48, %50 : vector<8x8xf32>
    %c0_20 = arith.constant 0 : index
    %c0_21 = arith.constant 0 : index
    %52 = vector.load %arg5[%c0_20, %c0_21] : memref<1x8xf32, #tpu.memory_space<vmem>>, vector<1x8xf32>
    %53 = vector.broadcast %52 : vector<1x8xf32> to vector<8x8xf32>
    %54 = arith.addf %51, %53 : vector<8x8xf32>
    %cst_22 = arith.constant 0.000000e+00 : f32
    %55 = vector.broadcast %cst_22 : f32 to vector<8x8xf32>
    %56 = arith.maximumf %54, %55 : vector<8x8xf32>
    %57 = tpu.iota {dimensions = array<i32: 0>} : vector<8x8xi32>
    %58 = tpu.iota {dimensions = array<i32: 1>} : vector<8x8xi32>
    %c1_i32_23 = arith.constant 1 : i32
    %59 = vector.broadcast %c1_i32_23 : i32 to vector<8x8xi32>
    %60 = arith.muli %59, %57 : vector<8x8xi32>
    %c-1_i32_24 = arith.constant -1 : i32
    %61 = vector.broadcast %c-1_i32_24 : i32 to vector<8x8xi32>
    %62 = arith.addi %60, %61 : vector<8x8xi32>
    %63 = arith.cmpi eq, %58, %62 : vector<8x8xi32>
    %64 = arith.extui %63 : vector<8x8xi1> to vector<8x8xi32>
    %65 = arith.sitofp %64 : vector<8x8xi32> to vector<8x8xf32>
    %cst_25 = arith.constant dense<0.000000e+00> : vector<8x8xf32>
    %66 = tpu.matmul %65, %56, %cst_25 {dimension_numbers = #tpu.dot_dimension_numbers<[1], [0], [0], [1], [0, 0, 1, 1], [], []>} : vector<8x8xf32>, vector<8x8xf32>, vector<8x8xf32> -> vector<8x8xf32>
    %67 = arith.truncf %66 : vector<8x8xf32> to vector<8x8xbf16>
    %c0_26 = arith.constant 0 : index
    %c0_27 = arith.constant 0 : index
    %c0_28 = arith.constant 0 : index
    %68 = vector.load %arg6[%c0_26, %c0_27, %c0_28] : memref<3x8x8xbf16, #tpu.memory_space<vmem>>, vector<1x8x8xbf16>
    %69 = vector.shape_cast %68 : vector<1x8x8xbf16> to vector<8x8xbf16>
    %cst_29 = arith.constant dense<0.000000e+00> : vector<8x8xf32>
    %70 = tpu.matmul %67, %69, %cst_29 {dimension_numbers = #tpu.dot_dimension_numbers<[1], [0], [0], [1], [0, 0, 1, 1], [], []>} : vector<8x8xbf16>, vector<8x8xbf16>, vector<8x8xf32> -> vector<8x8xf32>
    %71 = arith.truncf %56 : vector<8x8xf32> to vector<8x8xbf16>
    %c1_30 = arith.constant 1 : index
    %c0_31 = arith.constant 0 : index
    %c0_32 = arith.constant 0 : index
    %72 = vector.load %arg6[%c1_30, %c0_31, %c0_32] : memref<3x8x8xbf16, #tpu.memory_space<vmem>>, vector<1x8x8xbf16>
    %73 = vector.shape_cast %72 : vector<1x8x8xbf16> to vector<8x8xbf16>
    %cst_33 = arith.constant dense<0.000000e+00> : vector<8x8xf32>
    %74 = tpu.matmul %71, %73, %cst_33 {dimension_numbers = #tpu.dot_dimension_numbers<[1], [0], [0], [1], [0, 0, 1, 1], [], []>} : vector<8x8xbf16>, vector<8x8xbf16>, vector<8x8xf32> -> vector<8x8xf32>
    %75 = arith.addf %70, %74 : vector<8x8xf32>
    %76 = tpu.iota {dimensions = array<i32: 0>} : vector<8x8xi32>
    %77 = tpu.iota {dimensions = array<i32: 1>} : vector<8x8xi32>
    %c1_i32_34 = arith.constant 1 : i32
    %78 = vector.broadcast %c1_i32_34 : i32 to vector<8x8xi32>
    %79 = arith.muli %78, %76 : vector<8x8xi32>
    %c1_i32_35 = arith.constant 1 : i32
    %80 = vector.broadcast %c1_i32_35 : i32 to vector<8x8xi32>
    %81 = arith.addi %79, %80 : vector<8x8xi32>
    %82 = arith.cmpi eq, %77, %81 : vector<8x8xi32>
    %83 = arith.extui %82 : vector<8x8xi1> to vector<8x8xi32>
    %84 = arith.sitofp %83 : vector<8x8xi32> to vector<8x8xf32>
    %cst_36 = arith.constant dense<0.000000e+00> : vector<8x8xf32>
    %85 = tpu.matmul %84, %56, %cst_36 {dimension_numbers = #tpu.dot_dimension_numbers<[1], [0], [0], [1], [0, 0, 1, 1], [], []>} : vector<8x8xf32>, vector<8x8xf32>, vector<8x8xf32> -> vector<8x8xf32>
    %86 = arith.truncf %85 : vector<8x8xf32> to vector<8x8xbf16>
    %c2_37 = arith.constant 2 : index
    %c0_38 = arith.constant 0 : index
    %c0_39 = arith.constant 0 : index
    %87 = vector.load %arg6[%c2_37, %c0_38, %c0_39] : memref<3x8x8xbf16, #tpu.memory_space<vmem>>, vector<1x8x8xbf16>
    %88 = vector.shape_cast %87 : vector<1x8x8xbf16> to vector<8x8xbf16>
    %cst_40 = arith.constant dense<0.000000e+00> : vector<8x8xf32>
    %89 = tpu.matmul %86, %88, %cst_40 {dimension_numbers = #tpu.dot_dimension_numbers<[1], [0], [0], [1], [0, 0, 1, 1], [], []>} : vector<8x8xbf16>, vector<8x8xbf16>, vector<8x8xf32> -> vector<8x8xf32>
    %90 = arith.addf %75, %89 : vector<8x8xf32>
    %c0_41 = arith.constant 0 : index
    %c0_42 = arith.constant 0 : index
    %91 = vector.load %arg7[%c0_41, %c0_42] : memref<1x8xf32, #tpu.memory_space<vmem>>, vector<1x8xf32>
    %92 = vector.broadcast %91 : vector<1x8xf32> to vector<8x8xf32>
    %93 = arith.addf %90, %92 : vector<8x8xf32>
    %c0_43 = arith.constant 0 : index
    %c0_44 = arith.constant 0 : index
    %94 = vector.load %arg8[%c0_43, %c0_44] : memref<1x8xf32, #tpu.memory_space<vmem>>, vector<1x8xf32>
    %95 = vector.broadcast %94 : vector<1x8xf32> to vector<8x8xf32>
    %96 = arith.mulf %93, %95 : vector<8x8xf32>
    %c0_45 = arith.constant 0 : index
    %c0_46 = arith.constant 0 : index
    %97 = vector.load %arg9[%c0_45, %c0_46] : memref<1x8xf32, #tpu.memory_space<vmem>>, vector<1x8xf32>
    %98 = vector.broadcast %97 : vector<1x8xf32> to vector<8x8xf32>
    %99 = arith.addf %96, %98 : vector<8x8xf32>
    %cst_47 = arith.constant 0.000000e+00 : f32
    %100 = vector.broadcast %cst_47 : f32 to vector<8x8xf32>
    %101 = arith.maximumf %99, %100 : vector<8x8xf32>
    %102 = tpu.iota {dimensions = array<i32: 0>} : vector<8x16xi32>
    %103 = tpu.iota {dimensions = array<i32: 1>} : vector<8x16xi32>
    %c2_i32_48 = arith.constant 2 : i32
    %104 = vector.broadcast %c2_i32_48 : i32 to vector<8x16xi32>
    %105 = arith.muli %104, %102 : vector<8x16xi32>
    %c0_i32_49 = arith.constant 0 : i32
    %106 = vector.broadcast %c0_i32_49 : i32 to vector<8x16xi32>
    %107 = arith.addi %105, %106 : vector<8x16xi32>
    %108 = arith.cmpi eq, %103, %107 : vector<8x16xi32>
    %109 = arith.extui %108 : vector<8x16xi1> to vector<8x16xi32>
    %110 = arith.sitofp %109 : vector<8x16xi32> to vector<8x16xf32>
    %cst_50 = arith.constant dense<0.000000e+00> : vector<8x4xf32>
    %111 = tpu.matmul %110, %1, %cst_50 {dimension_numbers = #tpu.dot_dimension_numbers<[1], [0], [0], [1], [0, 0, 1, 1], [], []>} : vector<8x16xf32>, vector<16x4xf32>, vector<8x4xf32> -> vector<8x4xf32>
    %112 = arith.truncf %111 : vector<8x4xf32> to vector<8x4xbf16>
    %c0_51 = arith.constant 0 : index
    %c0_52 = arith.constant 0 : index
    %113 = vector.load %arg10[%c0_51, %c0_52] : memref<4x8xbf16, #tpu.memory_space<vmem>>, vector<4x8xbf16>
    %cst_53 = arith.constant dense<0.000000e+00> : vector<8x8xf32>
    %114 = tpu.matmul %112, %113, %cst_53 {dimension_numbers = #tpu.dot_dimension_numbers<[1], [0], [0], [1], [0, 0, 1, 1], [], []>} : vector<8x4xbf16>, vector<4x8xbf16>, vector<8x8xf32> -> vector<8x8xf32>
    %115 = arith.addf %114, %101 : vector<8x8xf32>
    %c0_54 = arith.constant 0 : index
    %c0_55 = arith.constant 0 : index
    %c0_56 = arith.constant 0 : index
    %116 = vector.load %arg11[%c0_54, %c0_55, %c0_56] : memref<1x8x8xf32, #tpu.memory_space<vmem>>, vector<1x8x8xf32>
    %117 = vector.shape_cast %116 : vector<1x8x8xf32> to vector<8x8xf32>
    %118 = vector.shape_cast %115 : vector<8x8xf32> to vector<1x8x8xf32>
    tpu.vector_store %arg11[%c0_54, %c0_55, %c0_56], %118 {strides = array<i32>} : memref<1x8x8xf32, #tpu.memory_space<vmem>>, vector<1x8x8xf32>,
    return
  }
  func.func @transform_0(%arg0: i32) -> (i32, i32, i32) {
    %c0_i32 = arith.constant 0 : i32
    %c0_i32_0 = arith.constant 0 : i32
    %c0_i32_1 = arith.constant 0 : i32
    return %arg0, %c0_i32, %c0_i32_0 : i32, i32, i32
  }
  func.func @transform_1(%arg0: i32) -> (i32, i32, i32) {
    %c0_i32 = arith.constant 0 : i32
    %c0_i32_0 = arith.constant 0 : i32
    %c0_i32_1 = arith.constant 0 : i32
    %c0_i32_2 = arith.constant 0 : i32
    return %c0_i32, %c0_i32_0, %c0_i32_1 : i32, i32, i32
  }
  func.func @transform_2(%arg0: i32) -> (i32, i32) {
    %c0_i32 = arith.constant 0 : i32
    %c0_i32_0 = arith.constant 0 : i32
    %c0_i32_1 = arith.constant 0 : i32
    return %c0_i32, %c0_i32_0 : i32, i32
  }
  func.func @transform_3(%arg0: i32) -> (i32, i32) {
    %c0_i32 = arith.constant 0 : i32
    %c0_i32_0 = arith.constant 0 : i32
    %c0_i32_1 = arith.constant 0 : i32
    return %c0_i32, %c0_i32_0 : i32, i32
  }
  func.func @transform_4(%arg0: i32) -> (i32, i32) {
    %c0_i32 = arith.constant 0 : i32
    %c0_i32_0 = arith.constant 0 : i32
    %c0_i32_1 = arith.constant 0 : i32
    return %c0_i32, %c0_i32_0 : i32, i32
  }
  func.func @transform_5(%arg0: i32) -> (i32, i32, i32) {
    %c0_i32 = arith.constant 0 : i32
    %c0_i32_0 = arith.constant 0 : i32
    %c0_i32_1 = arith.constant 0 : i32
    %c0_i32_2 = arith.constant 0 : i32
    return %c0_i32, %c0_i32_0, %c0_i32_1 : i32, i32, i32
  }
  func.func @transform_6(%arg0: i32) -> (i32, i32) {
    %c0_i32 = arith.constant 0 : i32
    %c0_i32_0 = arith.constant 0 : i32
    %c0_i32_1 = arith.constant 0 : i32
    return %c0_i32, %c0_i32_0 : i32, i32
  }
  func.func @transform_7(%arg0: i32) -> (i32, i32) {
    %c0_i32 = arith.constant 0 : i32
    %c0_i32_0 = arith.constant 0 : i32
    %c0_i32_1 = arith.constant 0 : i32
    return %c0_i32, %c0_i32_0 : i32, i32
  }
  func.func @transform_8(%arg0: i32) -> (i32, i32) {
    %c0_i32 = arith.constant 0 : i32
    %c0_i32_0 = arith.constant 0 : i32
    %c0_i32_1 = arith.constant 0 : i32
    return %c0_i32, %c0_i32_0 : i32, i32
  }
  func.func @transform_9(%arg0: i32) -> (i32, i32) {
    %c0_i32 = arith.constant 0 : i32
    %c0_i32_0 = arith.constant 0 : i32
    %c0_i32_1 = arith.constant 0 : i32
    return %c0_i32, %c0_i32_0 : i32, i32
  }
  func.func @transform_10(%arg0: i32) -> (i32, i32, i32) {
    %c0_i32 = arith.constant 0 : i32
    %c0_i32_0 = arith.constant 0 : i32
    %c0_i32_1 = arith.constant 0 : i32
    return %arg0, %c0_i32, %c0_i32_0 : i32, i32, i32
  }
}

</mosaic_0001>

<llo_original>
// kernel: tpu_custom_call.1
$region0: #{tpu_custom_call.1}
  #allocation0 [shape = 'u32[]', space=smem, size = 0x4, offset = 0x4, fixed_abs, tag = 'smem constant byte address 0x4 - core index']
  #allocation1 [shape = 'u32[72,128]{1,0:T(1,128)}', space=vmem, size = 0x9000, scoped, tag = 'internal scratch']
  %s0 = inlined_call_operand.vmem [shape: f32[2,16,4], index: 0, kind: input, shape index: {}]
  %s1 = inlined_call_operand.vmem [shape: bf16[3,4,8], index: 1, kind: input, shape index: {}]
  %s2 = inlined_call_operand.vmem [shape: f32[1,8], index: 2, kind: input, shape index: {}]
  %s3 = inlined_call_operand.vmem [shape: f32[1,8], index: 3, kind: input, shape index: {}]
  %s4 = inlined_call_operand.vmem [shape: f32[1,8], index: 4, kind: input, shape index: {}]
  %s5 = inlined_call_operand.vmem [shape: bf16[3,8,8], index: 5, kind: input, shape index: {}]
  %s6 = inlined_call_operand.vmem [shape: f32[1,8], index: 6, kind: input, shape index: {}]
  %s7 = inlined_call_operand.vmem [shape: f32[1,8], index: 7, kind: input, shape index: {}]
  %s8 = inlined_call_operand.vmem [shape: f32[1,8], index: 8, kind: input, shape index: {}]
  %s9 = inlined_call_operand.vmem [shape: bf16[4,8], index: 9, kind: input, shape index: {}]
  %s10 = inlined_call_operand.hbm [shape: f32[2,8,8], index: 10, kind: output, shape index: {}]
  %s11 = sld [smem:[#allocation0]]
  $region73: #{tpu_custom_call.1} parent=0
    _
  %s13 = ssub.s32 1, %s11
  %s14 = scalar_select 0, %s13, %s11
  $region1: #{tpu_custom_call.1} parent=0
    #allocation2 [shape = 'u8[8192]{0}', space=vmem, size = 0x2000, scoped, tag = 'output window, operand 0']
    #allocation3 [shape = 's32[2]{0}', space=sflag, size = 0x8, scoped, tag = 'scoped memory for tpu_custom_call.1']
    %15 = vsyncpa [#allocation3], 0
    %s16 = scalar_lea.sflag [#allocation3], 1
    %17 = vsyncpa %s16, 0
    loop: start=0, step=1, limit=4
    $region2: #{tpu_custom_call.1} parent=1 // loop_pre_header
      _
    $region3: #{tpu_custom_call.1} parent=1 // loop_header
      %s19 = sphi 0, %s23
      %p20 = scmp.ge.s32.totalorder %s19, 4
      %s29 = sphi 0, %s31
      %s32 = sphi 0, %s29
      %s33 = sphi 0, %s32
      %s49 = sphi 0, %s33
      %s53 = sphi 0, %s53
      %s55 = sphi 0, %s53
      %s56 = sphi 0, %s55
      %s70 = sphi 0, %s56
      %s74 = sphi 0, %s74
      %s76 = sphi 0, %s74
      %s77 = sphi 0, %s76
      %s91 = sphi 0, %s77
      %s95 = sphi 0, %s95
      %s97 = sphi 0, %s95
      %s98 = sphi 0, %s97
      %s112 = sphi 0, %s98
      %s116 = sphi 0, %s116
      %s118 = sphi 0, %s116
      %s119 = sphi 0, %s118
      %s133 = sphi 0, %s119
      %s137 = sphi 0, %s137
      %s139 = sphi 0, %s137
      %s140 = sphi 0, %s139
      %s154 = sphi 0, %s140
      %s158 = sphi 0, %s158
      %s160 = sphi 0, %s158
      %s161 = sphi 0, %s160
      %s175 = sphi 0, %s161
      %s179 = sphi 0, %s179
      %s181 = sphi 0, %s179
      %s182 = sphi 0, %s181
      %s196 = sphi 0, %s182
      %s200 = sphi 0, %s200
      %s202 = sphi 0, %s200
      %s203 = sphi 0, %s202
      %s217 = sphi 0, %s203
      %s221 = sphi 0, %s221
      %s223 = sphi 0, %s221
      %s224 = sphi 0, %s223
      %s238 = sphi 0, %s224
      %s244 = sphi 0, %s246
      %s247 = sphi 0, %s244
      %s248 = sphi 0, %s247
      %s264 = sphi 0, %s248
    $region4: #{tpu_custom_call.1} parent=1 // loop_header_branch
      %22 = sbr.rel (%p20) target = $region8
    $region5: #{tpu_custom_call.1} parent=1 // loop_body
      %s24 = ssub.s32 %s19, 1
      %s25 = ssub.s32 %s19, 2
      %s26 = sadd.s32 %s19, 1
      %s27 = ssub.s32 %s19, %s26
      %p28 = scmp.eq.s32.totalorder %s27, 0
      %s30 = sadd.s32 %s29, 1
      %s31 = scalar_select %p28, %s29, %s30
      %p34 = pneg %p28
      %p35 = scmp.eq.s32.totalorder %s19, 1
      %p36 = por %p34, %p35
      %p37 = scmp.ne.s32.totalorder %s29, %s32
      %p38 = scmp.eq.s32.totalorder %s19, 0
      %p39 = por %p37, %p38
      %p40 = scmp.ne.s32.totalorder %s29, %s32
      %p41 = scmp.eq.s32.totalorder %s24, 1
      %p42 = por %p40, %p41
      %p43 = scmp.ne.s32.totalorder %s32, %s33
      %p44 = scmp.eq.s32.totalorder %s24, 0
      %p45 = por %p43, %p44
      %p46 = scmp.ne.s32.totalorder %s32, %s33
      %p47 = scmp.eq.s32.totalorder %s25, 1
      %p48 = por %p46, %p47
      %p50 = scmp.ne.s32.totalorder %s33, %s49
      %p51 = scmp.eq.s32.totalorder %s25, 0
      %p52 = por %p50, %p51
      %s54 = sadd.s32 %s53, 1
      %p57 = scmp.eq.s32.totalorder %s19, 1
      %p58 = scmp.ne.s32.totalorder %s53, %s55
      %p59 = scmp.eq.s32.totalorder %s19, 0
      %p60 = por %p58, %p59
      %p61 = scmp.ne.s32.totalorder %s53, %s55
      %p62 = scmp.eq.s32.totalorder %s24, 1
      %p63 = por %p61, %p62
      %p64 = scmp.ne.s32.totalorder %s55, %s56
      %p65 = scmp.eq.s32.totalorder %s24, 0
      %p66 = por %p64, %p65
      %p67 = scmp.ne.s32.totalorder %s55, %s56
      %p68 = scmp.eq.s32.totalorder %s25, 1
      %p69 = por %p67, %p68
      %p71 = scmp.ne.s32.totalorder %s56, %s70
      %p72 = scmp.eq.s32.totalorder %s25, 0
      %p73 = por %p71, %p72
      %s75 = sadd.s32 %s74, 1
      %p78 = scmp.eq.s32.totalorder %s19, 1
      %p79 = scmp.ne.s32.totalorder %s74, %s76
      %p80 = scmp.eq.s32.totalorder %s19, 0
      %p81 = por %p79, %p80
      %p82 = scmp.ne.s32.totalorder %s74, %s76
      %p83 = scmp.eq.s32.totalorder %s24, 1
      %p84 = por %p82, %p83
      %p85 = scmp.ne.s32.totalorder %s76, %s77
      %p86 = scmp.eq.s32.totalorder %s24, 0
      %p87 = por %p85, %p86
      %p88 = scmp.ne.s32.totalorder %s76, %s77
      %p89 = scmp.eq.s32.totalorder %s25, 1
      %p90 = por %p88, %p89
      %p92 = scmp.ne.s32.totalorder %s77, %s91
      %p93 = scmp.eq.s32.totalorder %s25, 0
      %p94 = por %p92, %p93
      %s96 = sadd.s32 %s95, 1
      %p99 = scmp.eq.s32.totalorder %s19, 1
      %p100 = scmp.ne.s32.totalorder %s95, %s97
      %p101 = scmp.eq.s32.totalorder %s19, 0
      %p102 = por %p100, %p101
      %p103 = scmp.ne.s32.totalorder %s95, %s97
      %p104 = scmp.eq.s32.totalorder %s24, 1
      %p105 = por %p103, %p104
      %p106 = scmp.ne.s32.totalorder %s97, %s98
      %p107 = scmp.eq.s32.totalorder %s24, 0
      %p108 = por %p106, %p107
      %p109 = scmp.ne.s32.totalorder %s97, %s98
      %p110 = scmp.eq.s32.totalorder %s25, 1
      %p111 = por %p109, %p110
      %p113 = scmp.ne.s32.totalorder %s98, %s112
      %p114 = scmp.eq.s32.totalorder %s25, 0
      %p115 = por %p113, %p114
      %s117 = sadd.s32 %s116, 1
      %p120 = scmp.eq.s32.totalorder %s19, 1
      %p121 = scmp.ne.s32.totalorder %s116, %s118
      %p122 = scmp.eq.s32.totalorder %s19, 0
      %p123 = por %p121, %p122
      %p124 = scmp.ne.s32.totalorder %s116, %s118
      %p125 = scmp.eq.s32.totalorder %s24, 1
      %p126 = por %p124, %p125
      %p127 = scmp.ne.s32.totalorder %s118, %s119
      %p128 = scmp.eq.s32.totalorder %s24, 0
      %p129 = por %p127, %p128
      %p130 = scmp.ne.s32.totalorder %s118, %s119
      %p131 = scmp.eq.s32.totalorder %s25, 1
      %p132 = por %p130, %p131
      %p134 = scmp.ne.s32.totalorder %s119, %s133
      %p135 = scmp.eq.s32.totalorder %s25, 0
      %p136 = por %p134, %p135
      %s138 = sadd.s32 %s137, 1
      %p141 = scmp.eq.s32.totalorder %s19, 1
      %p142 = scmp.ne.s32.totalorder %s137, %s139
      %p143 = scmp.eq.s32.totalorder %s19, 0
      %p144 = por %p142, %p143
      %p145 = scmp.ne.s32.totalorder %s137, %s139
      %p146 = scmp.eq.s32.totalorder %s24, 1
      %p147 = por %p145, %p146
      %p148 = scmp.ne.s32.totalorder %s139, %s140
      %p149 = scmp.eq.s32.totalorder %s24, 0
      %p150 = por %p148, %p149
      %p151 = scmp.ne.s32.totalorder %s139, %s140
      %p152 = scmp.eq.s32.totalorder %s25, 1
      %p153 = por %p151, %p152
      %p155 = scmp.ne.s32.totalorder %s140, %s154
      %p156 = scmp.eq.s32.totalorder %s25, 0
      %p157 = por %p155, %p156
      %s159 = sadd.s32 %s158, 1
      %p162 = scmp.eq.s32.totalorder %s19, 1
      %p163 = scmp.ne.s32.totalorder %s158, %s160
      %p164 = scmp.eq.s32.totalorder %s19, 0
      %p165 = por %p163, %p164
      %p166 = scmp.ne.s32.totalorder %s158, %s160
      %p167 = scmp.eq.s32.totalorder %s24, 1
      %p168 = por %p166, %p167
      %p169 = scmp.ne.s32.totalorder %s160, %s161
      %p170 = scmp.eq.s32.totalorder %s24, 0
      %p171 = por %p169, %p170
      %p172 = scmp.ne.s32.totalorder %s160, %s161
      %p173 = scmp.eq.s32.totalorder %s25, 1
      %p174 = por %p172, %p173
      %p176 = scmp.ne.s32.totalorder %s161, %s175
      %p177 = scmp.eq.s32.totalorder %s25, 0
      %p178 = por %p176, %p177
      %s180 = sadd.s32 %s179, 1
      %p183 = scmp.eq.s32.totalorder %s19, 1
      %p184 = scmp.ne.s32.totalorder %s179, %s181
      %p185 = scmp.eq.s32.totalorder %s19, 0
      %p186 = por %p184, %p185
      %p187 = scmp.ne.s32.totalorder %s179, %s181
      %p188 = scmp.eq.s32.totalorder %s24, 1
      %p189 = por %p187, %p188
      %p190 = scmp.ne.s32.totalorder %s181, %s182
      %p191 = scmp.eq.s32.totalorder %s24, 0
      %p192 = por %p190, %p191
      %p193 = scmp.ne.s32.totalorder %s181, %s182
      %p194 = scmp.eq.s32.totalorder %s25, 1
      %p195 = por %p193, %p194
      %p197 = scmp.ne.s32.totalorder %s182, %s196
      %p198 = scmp.eq.s32.totalorder %s25, 0
      %p199 = por %p197, %p198
      %s201 = sadd.s32 %s200, 1
      %p204 = scmp.eq.s32.totalorder %s19, 1
      %p205 = scmp.ne.s32.totalorder %s200, %s202
      %p206 = scmp.eq.s32.totalorder %s19, 0
      %p207 = por %p205, %p206
      %p208 = scmp.ne.s32.totalorder %s200, %s202
      %p209 = scmp.eq.s32.totalorder %s24, 1
      %p210 = por %p208, %p209
      %p211 = scmp.ne.s32.totalorder %s202, %s203
      %p212 = scmp.eq.s32.totalorder %s24, 0
      %p213 = por %p211, %p212
      %p214 = scmp.ne.s32.totalorder %s202, %s203
      %p215 = scmp.eq.s32.totalorder %s25, 1
      %p216 = por %p214, %p215
      %p218 = scmp.ne.s32.totalorder %s203, %s217
      %p219 = scmp.eq.s32.totalorder %s25, 0
      %p220 = por %p218, %p219
      %s222 = sadd.s32 %s221, 1
      %p225 = scmp.eq.s32.totalorder %s19, 1
      %p226 = scmp.ne.s32.totalorder %s221, %s223
      %p227 = scmp.eq.s32.totalorder %s19, 0
      %p228 = por %p226, %p227
      %p229 = scmp.ne.s32.totalorder %s221, %s223
      %p230 = scmp.eq.s32.totalorder %s24, 1
      %p231 = por %p229, %p230
      %p232 = scmp.ne.s32.totalorder %s223, %s224
      %p233 = scmp.eq.s32.totalorder %s24, 0
      %p234 = por %p232, %p233
      %p235 = scmp.ne.s32.totalorder %s223, %s224
      %p236 = scmp.eq.s32.totalorder %s25, 1
      %p237 = por %p235, %p236
      %p239 = scmp.ne.s32.totalorder %s224, %s238
      %p240 = scmp.eq.s32.totalorder %s25, 0
      %p241 = por %p239, %p240
      %s242 = ssub.s32 %s19, %s26
      %p243 = scmp.eq.s32.totalorder %s242, 0
      %s245 = sadd.s32 %s244, 1
      %s246 = scalar_select %p243, %s244, %s245
      %p249 = pneg %p243
      %p250 = scmp.eq.s32.totalorder %s19, 1
      %p251 = por %p249, %p250
      %p252 = scmp.ne.s32.totalorder %s244, %s247
      %p253 = scmp.eq.s32.totalorder %s19, 0
      %p254 = por %p252, %p253
      %p255 = scmp.ne.s32.totalorder %s244, %s247
      %p256 = scmp.eq.s32.totalorder %s24, 1
      %p257 = por %p255, %p256
      %p258 = scmp.ne.s32.totalorder %s247, %s248
      %p259 = scmp.eq.s32.totalorder %s24, 0
      %p260 = por %p258, %p259
      %p261 = scmp.ne.s32.totalorder %s247, %s248
      %p262 = scmp.eq.s32.totalorder %s25, 1
      %p263 = por %p261, %p262
      %p265 = scmp.ne.s32.totalorder %s248, %s264
      %p266 = scmp.eq.s32.totalorder %s25, 0
      %p267 = por %p265, %p266
      %p268 = scmp.le.s32.totalorder 1, %s19
      %p269 = scmp.lt.s32.totalorder %s19, 3
      %p270 = pnand %p268, %p269
      %p271 = pneg %p270
      // Predicated region
      $region9: #{tpu_custom_call.1} parent=5 // pred_check
        _
      $region10: #{tpu_custom_call.1} parent=5 // pred_check_branch
        %273 = sbr.rel (%p270) target = $region12
      $region11: #{tpu_custom_call.1} parent=5 // pred_region
        %s274 = ssub.s32 %s19, 1
        // Predicated region
        $region13: #{tpu_custom_call.1} parent=11 // pred_check
          %p275 = pneg %p66
        $region14: #{tpu_custom_call.1} parent=11 // pred_check_branch
          %277 = sbr.rel (%p275) target = $region16
        $region15: #{tpu_custom_call.1} parent=11 // pred_region
          _
        $region16: #{tpu_custom_call.1} parent=11 // pred_fallthru
          _
        // Predicated region
        $region17: #{tpu_custom_call.1} parent=11 // pred_check
          %p278 = pneg %p87
        $region18: #{tpu_custom_call.1} parent=11 // pred_check_branch
          %280 = sbr.rel (%p278) target = $region20
        $region19: #{tpu_custom_call.1} parent=11 // pred_region
          _
        $region20: #{tpu_custom_call.1} parent=11 // pred_fallthru
          _
        // Predicated region
        $region21: #{tpu_custom_call.1} parent=11 // pred_check
          %p281 = pneg %p108
        $region22: #{tpu_custom_call.1} parent=11 // pred_check_branch
          %283 = sbr.rel (%p281) target = $region24
        $region23: #{tpu_custom_call.1} parent=11 // pred_region
          _
        $region24: #{tpu_custom_call.1} parent=11 // pred_fallthru
          _
        // Predicated region
        $region25: #{tpu_custom_call.1} parent=11 // pred_check
          %p284 = pneg %p129
        $region26: #{tpu_custom_call.1} parent=11 // pred_check_branch
          %286 = sbr.rel (%p284) target = $region28
        $region27: #{tpu_custom_call.1} parent=11 // pred_region
          _
        $region28: #{tpu_custom_call.1} parent=11 // pred_fallthru
          _
        // Predicated region
        $region29: #{tpu_custom_call.1} parent=11 // pred_check
          %p287 = pneg %p150
        $region30: #{tpu_custom_call.1} parent=11 // pred_check_branch
          %289 = sbr.rel (%p287) target = $region32
        $region31: #{tpu_custom_call.1} parent=11 // pred_region
          _
        $region32: #{tpu_custom_call.1} parent=11 // pred_fallthru
          _
        // Predicated region
        $region33: #{tpu_custom_call.1} parent=11 // pred_check
          %p290 = pneg %p171
        $region34: #{tpu_custom_call.1} parent=11 // pred_check_branch
          %292 = sbr.rel (%p290) target = $region36
        $region35: #{tpu_custom_call.1} parent=11 // pred_region
          _
        $region36: #{tpu_custom_call.1} parent=11 // pred_fallthru
          _
        // Predicated region
        $region37: #{tpu_custom_call.1} parent=11 // pred_check
          %p293 = pneg %p192
        $region38: #{tpu_custom_call.1} parent=11 // pred_check_branch
          %295 = sbr.rel (%p293) target = $region40
        $region39: #{tpu_custom_call.1} parent=11 // pred_region
          _
        $region40: #{tpu_custom_call.1} parent=11 // pred_fallthru
          _
        // Predicated region
        $region41: #{tpu_custom_call.1} parent=11 // pred_check
          %p296 = pneg %p213
        $region42: #{tpu_custom_call.1} parent=11 // pred_check_branch
          %298 = sbr.rel (%p296) target = $region44
        $region43: #{tpu_custom_call.1} parent=11 // pred_region
          _
        $region44: #{tpu_custom_call.1} parent=11 // pred_fallthru
          _
        // Predicated region
        $region45: #{tpu_custom_call.1} parent=11 // pred_check
          %p299 = pneg %p234
        $region46: #{tpu_custom_call.1} parent=11 // pred_check_branch
          %301 = sbr.rel (%p299) target = $region48
        $region47: #{tpu_custom_call.1} parent=11 // pred_region
          _
        $region48: #{tpu_custom_call.1} parent=11 // pred_fallthru
          _
      $region12: #{tpu_custom_call.1} parent=5 // pred_fallthru
        _
      %p302 = scmp.lt.s32.totalorder %s19, 2
      // Predicated region
      $region49: #{tpu_custom_call.1} parent=5 // pred_check
        %p303 = pneg %p302
      $region50: #{tpu_custom_call.1} parent=5 // pred_check_branch
        %305 = sbr.rel (%p303) target = $region52
      $region51: #{tpu_custom_call.1} parent=5 // pred_region
        // Predicated region
        $region53: #{tpu_custom_call.1} parent=51 // pred_check
          %p306 = pneg %p39
        $region54: #{tpu_custom_call.1} parent=51 // pred_check_branch
          %308 = sbr.rel (%p306) target = $region56
        $region55: #{tpu_custom_call.1} parent=51 // pred_region
          %p309 = scmp.lt.s32.totalorder %s19, 1
          %s310 = scalar_select %p309, %s19, 1
          %s311 = smul.addr %s310, 2
          %s312 = smul.addr %s311, 8
          %s313 = scalar_lea.vmem %s0, %s312
        $region56: #{tpu_custom_call.1} parent=51 // pred_fallthru
          _
      $region52: #{tpu_custom_call.1} parent=5 // pred_fallthru
        _
      %p314 = scmp.le.s32.totalorder 1, %s19
      %p315 = scmp.lt.s32.totalorder %s19, 3
      %p316 = pnand %p314, %p315
      %p317 = pneg %p316
      // Predicated region
      $region57: #{tpu_custom_call.1} parent=5 // pred_check
        _
      $region58: #{tpu_custom_call.1} parent=5 // pred_check_branch
        %319 = sbr.rel (%p316) target = $region60
      $region59: #{tpu_custom_call.1} parent=5 // pred_region
        %s320 = ssub.s32 %s19, 1
        %p321 = scmp.lt.s32.totalorder %s24, 1
        %s322 = scalar_select %p321, %s24, 1
        %s323 = smul.addr %s322, 2
        %s324 = smul.addr %s323, 8
        %s325 = scalar_lea.vmem %s0, %s324
        %p326 = pneg %p45
        %p327 = pneg %p42
        %p328 = pneg %p66
        %p329 = pneg %p63
        %p330 = pneg %p87
        %p331 = pneg %p84
        %p332 = pneg %p108
        %p333 = pneg %p105
        %p334 = pneg %p129
        %p335 = pneg %p126
        %p336 = pneg %p150
        %p337 = pneg %p147
        %p338 = pneg %p171
        %p339 = pneg %p168
        %p340 = pneg %p192
        %p341 = pneg %p189
        %p342 = pneg %p213
        %p343 = pneg %p210
        %p344 = pneg %p234
        %p345 = pneg %p231
        %p346 = pneg %p260
        %p347 = pneg %p257
        %s348 = sand.u32 %s247, 1
        %s349 = scalar_lea.sflag [#allocation3], %s348
        %s350 = sand.u32 %s247, 1
        %s351 = smul.addr %s350, 8
        %s352 = scalar_lea.vmem [#allocation2], %s351
        %p353 = scmp.lt.s32.totalorder %s24, 1
        %s354 = scalar_select %p353, %s24, 1
        %s355 = smul.addr %s354, 2
        %s356 = smul.addr %s355, 8
        %s357 = scalar_lea.vmem %s0, %s356
        %v359 = vld [vmem:[%s357] sm:$0xff]
        %v360 = vld [vmem:[%s357 + $0x8] sm:$0xff]
        %v361 = vlaneseq
        %v362 = vshrl.u32 %v361, 7
        %v363 = vlaneseq
        %v364 = vand.u32 %v363, 127
        %v365 = vmul.u32 %v362, 2
        %v366 = vadd.s32 %v365, 4294967295
        %vm367 = vcmp.eq.s32.totalorder %v364, %v366
        %v368 = vsel %vm367, 1, 0
        %v369 = vcvt.s32.f32 %v368
        %vm370 = vcmask 130048
        %v372 = vsel %vm370, %v369, 0
        %374 = vmatpush.msra.mxu0 0.0
        %375 = vmatpush.msra.mxu0 0.0
        %376 = vmatpush.msra.mxu0 0.0
        %377 = vmatpush.msra.mxu0 0.0
        %378 = vmatpush.msra.mxu0 0.0
        %379 = vmatpush.msra.mxu0 0.0
        %380 = vmatpush.msra.mxu0 0.0
        %381 = vmatpush.msra.mxu0 0.0
        %382 = vmatpush.msra.mxu0 0.0
        %383 = vmatpush.msra.mxu0 0.0
        %384 = vmatpush.msra.mxu0 0.0
        %385 = vmatpush.msra.mxu0 0.0
        %386 = vmatpush.msra.mxu0 0.0
        %387 = vmatpush.msra.mxu0 0.0
        %388 = vmatpush.msra.mxu0 %v360
        %389 = vmatpush.msra.mxu0 %v359
        %390 = vmatmul.f32.gmra.mxu0 %v372
        %v391 = vpop.f32.mrf.mxu0
        %v392 = vadd.f32 0.0, %v391
        %393 = vdwg.mxu0
        %v394 = vpack.c.bf16 %v392, %v392
        %v395 = vld [vmem:[%s1] sm:$0x3]
        %vm396 = vcmp.eq.s32.totalorder %v364, %v365
        %v397 = vsel %vm396, 1, 0
        %v398 = vcvt.s32.f32 %v397
        %v400 = vsel %vm370, %v398, 0
        %402 = vmatpush.msra.mxu0 0.0
        %403 = vmatpush.msra.mxu0 0.0
        %404 = vmatpush.msra.mxu0 0.0
        %405 = vmatpush.msra.mxu0 0.0
        %406 = vmatpush.msra.mxu0 0.0
        %407 = vmatpush.msra.mxu0 0.0
        %408 = vmatpush.msra.mxu0 0.0
        %409 = vmatpush.msra.mxu0 0.0
        %410 = vmatpush.msra.mxu0 0.0
        %411 = vmatpush.msra.mxu0 0.0
        %412 = vmatpush.msra.mxu0 0.0
        %413 = vmatpush.msra.mxu0 0.0
        %414 = vmatpush.msra.mxu0 0.0
        %415 = vmatpush.msra.mxu0 0.0
        %416 = vmatpush.msra.mxu0 %v360
        %417 = vmatpush.msra.mxu0 %v359
        %418 = vmatmul.f32.gmra.mxu0 %v400
        %v419 = vpop.f32.mrf.mxu0
        %v420 = vadd.f32 0.0, %v419
        %421 = vdwg.mxu0
        %v422 = vpack.c.bf16 %v420, %v420
        %s423 = scalar_lea.vmem %s1, 2
        %v424 = vld [vmem:[%s423] sm:$0x3]
        %vm425 = vcmask 31744
        %v427 = vsel %vm425, %v422, 0
        %vm429 = vcmask 1041408
        %v431 = vsel %vm429, %v424, 0
        %433 = vmatpush.bf16.msra.mxu0 0
        %434 = vmatpush.bf16.msra.mxu0 0
        %435 = vmatpush.bf16.msra.mxu0 0
        %436 = vmatpush.bf16.msra.mxu0 0
        %437 = vmatpush.bf16.msra.mxu0 0
        %438 = vmatpush.bf16.msra.mxu0 0
        %439 = vmatpush.bf16.msra.mxu0 0
        %440 = vmatpush.bf16.msra.mxu0 %v431
        %441 = vmatmul.bf16.gmra.mxu0 %v427
        %v442 = vpop.f32.mrf.mxu0
        %v443 = vadd.f32 0.0, %v442
        %v444 = vpop.f32.mrf.mxu0
        %445 = vdwg.mxu0
        %v447 = vsel %vm425, %v394, 0
        %v450 = vsel %vm429, %v395, 0
        %452 = vmatpush.bf16.msra.mxu0 0
        %453 = vmatpush.bf16.msra.mxu0 0
        %454 = vmatpush.bf16.msra.mxu0 0
        %455 = vmatpush.bf16.msra.mxu0 0
        %456 = vmatpush.bf16.msra.mxu0 0
        %457 = vmatpush.bf16.msra.mxu0 0
        %458 = vmatpush.bf16.msra.mxu0 0
        %459 = vmatpush.bf16.msra.mxu0 %v450
        %460 = vmatmul.bf16.gmra.mxu0 %v447
        %v461 = vpop.f32.mrf.mxu0
        %v462 = vadd.f32 %v443, %v461
        %v463 = vpop.f32.mrf.mxu0
        %464 = vdwg.mxu0
        %v465 = vadd.s32 %v365, 1
        %vm466 = vcmp.eq.s32.totalorder %v364, %v465
        %v467 = vsel %vm466, 1, 0
        %v468 = vcvt.s32.f32 %v467
        %v470 = vsel %vm370, %v468, 0
        %472 = vmatpush.msra.mxu0 0.0
        %473 = vmatpush.msra.mxu0 0.0
        %474 = vmatpush.msra.mxu0 0.0
        %475 = vmatpush.msra.mxu0 0.0
        %476 = vmatpush.msra.mxu0 0.0
        %477 = vmatpush.msra.mxu0 0.0
        %478 = vmatpush.msra.mxu0 0.0
        %479 = vmatpush.msra.mxu0 0.0
        %480 = vmatpush.msra.mxu0 0.0
        %481 = vmatpush.msra.mxu0 0.0
        %482 = vmatpush.msra.mxu0 0.0
        %483 = vmatpush.msra.mxu0 0.0
        %484 = vmatpush.msra.mxu0 0.0
        %485 = vmatpush.msra.mxu0 0.0
        %486 = vmatpush.msra.mxu0 %v360
        %487 = vmatpush.msra.mxu0 %v359
        %488 = vmatmul.f32.gmra.mxu0 %v470
        %v489 = vpop.f32.mrf.mxu0
        %v490 = vadd.f32 0.0, %v489
        %491 = vdwg.mxu0
        %v492 = vpack.c.bf16 %v490, %v490
        %s493 = scalar_lea.vmem %s1, 4
        %v494 = vld [vmem:[%s493] sm:$0x3]
        %v496 = vsel %vm425, %v492, 0
        %v499 = vsel %vm429, %v494, 0
        %501 = vmatpush.bf16.msra.mxu0 0
        %502 = vmatpush.bf16.msra.mxu0 0
        %503 = vmatpush.bf16.msra.mxu0 0
        %504 = vmatpush.bf16.msra.mxu0 0
        %505 = vmatpush.bf16.msra.mxu0 0
        %506 = vmatpush.bf16.msra.mxu0 0
        %507 = vmatpush.bf16.msra.mxu0 0
        %508 = vmatpush.bf16.msra.mxu0 %v499
        %509 = vmatmul.bf16.gmra.mxu0 %v496
        %v510 = vpop.f32.mrf.mxu0
        %v511 = vadd.f32 0.0, %v510
        %v512 = vpop.f32.mrf.mxu0
        %513 = vdwg.mxu0
        %v514 = vadd.f32 %v462, %v511
        %v515 = vld [vmem:[%s2] sm:$0x1]
        %v517 = vperm.slane %v515, 0
        %v519 = vadd.f32 %v514, %v517
        %v520 = vld [vmem:[%s3] sm:$0x1]
        %v522 = vperm.slane %v520, 0
        %v524 = vmul.f32 %v519, %v522
        %v525 = vld [vmem:[%s4] sm:$0x1]
        %v527 = vperm.slane %v525, 0
        %v529 = vadd.f32 %v524, %v527
        %v530 = vmax.f32 %v529, 0.0
        %v531 = vadd.s32 %v362, 4294967295
        %vm532 = vcmp.eq.s32.totalorder %v364, %v531
        %v533 = vsel %vm532, 1, 0
        %v534 = vcvt.s32.f32 %v533
        %vm535 = vcmask 64512
        %v537 = vsel %vm535, %v534, 0
        %539 = vmatpush.msra.mxu0 0.0
        %540 = vmatpush.msra.mxu0 0.0
        %541 = vmatpush.msra.mxu0 0.0
        %542 = vmatpush.msra.mxu0 0.0
        %543 = vmatpush.msra.mxu0 0.0
        %544 = vmatpush.msra.mxu0 0.0
        %545 = vmatpush.msra.mxu0 0.0
        %546 = vmatpush.msra.mxu0 0.0
        %547 = vmatpush.msra.mxu0 0.0
        %548 = vmatpush.msra.mxu0 0.0
        %549 = vmatpush.msra.mxu0 0.0
        %550 = vmatpush.msra.mxu0 0.0
        %551 = vmatpush.msra.mxu0 0.0
        %552 = vmatpush.msra.mxu0 0.0
        %553 = vmatpush.msra.mxu0 0.0
        %554 = vmatpush.msra.mxu0 %v530
        %555 = vmatmul.f32.gmra.mxu0 %v537
        %v556 = vpop.f32.mrf.mxu0
        %v557 = vadd.f32 0.0, %v556
        %558 = vdwg.mxu0
        %v559 = vpack.c.bf16 %v557, %v557
        %v560 = vld [vmem:[%s5] sm:$0xf]
        %v561 = vpack.c.bf16 %v530, %v530
        %s562 = scalar_lea.vmem %s5, 4
        %v563 = vld [vmem:[%s562] sm:$0xf]
        %v565 = vsel %vm535, %v561, 0
        %vm567 = vcmask 1043456
        %v569 = vsel %vm567, %v563, 0
        %571 = vmatpush.bf16.msra.mxu0 0
        %572 = vmatpush.bf16.msra.mxu0 0
        %573 = vmatpush.bf16.msra.mxu0 0
        %574 = vmatpush.bf16.msra.mxu0 0
        %575 = vmatpush.bf16.msra.mxu0 0
        %576 = vmatpush.bf16.msra.mxu0 0
        %577 = vmatpush.bf16.msra.mxu0 0
        %578 = vmatpush.bf16.msra.mxu0 %v569
        %579 = vmatmul.bf16.gmra.mxu0 %v565
        %v580 = vpop.f32.mrf.mxu0
        %v581 = vadd.f32 0.0, %v580
        %v582 = vpop.f32.mrf.mxu0
        %583 = vdwg.mxu0
        %v585 = vsel %vm535, %v559, 0
        %v588 = vsel %vm567, %v560, 0
        %590 = vmatpush.bf16.msra.mxu0 0
        %591 = vmatpush.bf16.msra.mxu0 0
        %592 = vmatpush.bf16.msra.mxu0 0
        %593 = vmatpush.bf16.msra.mxu0 0
        %594 = vmatpush.bf16.msra.mxu0 0
        %595 = vmatpush.bf16.msra.mxu0 0
        %596 = vmatpush.bf16.msra.mxu0 0
        %597 = vmatpush.bf16.msra.mxu0 %v588
        %598 = vmatmul.bf16.gmra.mxu0 %v585
        %v599 = vpop.f32.mrf.mxu0
        %v600 = vadd.f32 %v581, %v599
        %v601 = vpop.f32.mrf.mxu0
        %602 = vdwg.mxu0
        %v603 = vadd.s32 %v362, 1
        %vm604 = vcmp.eq.s32.totalorder %v364, %v603
        %v605 = vsel %vm604, 1, 0
        %v606 = vcvt.s32.f32 %v605
        %v608 = vsel %vm535, %v606, 0
        %610 = vmatpush.msra.mxu0 0.0
        %611 = vmatpush.msra.mxu0 0.0
        %612 = vmatpush.msra.mxu0 0.0
        %613 = vmatpush.msra.mxu0 0.0
        %614 = vmatpush.msra.mxu0 0.0
        %615 = vmatpush.msra.mxu0 0.0
        %616 = vmatpush.msra.mxu0 0.0
        %617 = vmatpush.msra.mxu0 0.0
        %618 = vmatpush.msra.mxu0 0.0
        %619 = vmatpush.msra.mxu0 0.0
        %620 = vmatpush.msra.mxu0 0.0
        %621 = vmatpush.msra.mxu0 0.0
        %622 = vmatpush.msra.mxu0 0.0
        %623 = vmatpush.msra.mxu0 0.0
        %624 = vmatpush.msra.mxu0 0.0
        %625 = vmatpush.msra.mxu0 %v530
        %626 = vmatmul.f32.gmra.mxu0 %v608
        %v627 = vpop.f32.mrf.mxu0
        %v628 = vadd.f32 0.0, %v627
        %629 = vdwg.mxu0
        %v630 = vpack.c.bf16 %v628, %v628
        %s631 = scalar_lea.vmem %s5, 8
        %v632 = vld [vmem:[%s631] sm:$0xf]
        %v634 = vsel %vm535, %v630, 0
        %v637 = vsel %vm567, %v632, 0
        %639 = vmatpush.bf16.msra.mxu0 0
        %640 = vmatpush.bf16.msra.mxu0 0
        %641 = vmatpush.bf16.msra.mxu0 0
        %642 = vmatpush.bf16.msra.mxu0 0
        %643 = vmatpush.bf16.msra.mxu0 0
        %644 = vmatpush.bf16.msra.mxu0 0
        %645 = vmatpush.bf16.msra.mxu0 0
        %646 = vmatpush.bf16.msra.mxu0 %v637
        %647 = vmatmul.bf16.gmra.mxu0 %v634
        %v648 = vpop.f32.mrf.mxu0
        %v649 = vadd.f32 0.0, %v648
        %v650 = vpop.f32.mrf.mxu0
        %651 = vdwg.mxu0
        %v652 = vadd.f32 %v600, %v649
        %v653 = vld [vmem:[%s6] sm:$0x1]
        %v655 = vperm.slane %v653, 0
        %v657 = vadd.f32 %v652, %v655
        %v658 = vld [vmem:[%s7] sm:$0x1]
        %v660 = vperm.slane %v658, 0
        %v662 = vmul.f32 %v657, %v660
        %v663 = vld [vmem:[%s8] sm:$0x1]
        %v665 = vperm.slane %v663, 0
        %v667 = vadd.f32 %v662, %v665
        %v668 = vmax.f32 %v667, 0.0
        %v669 = vld [vmem:[%s9] sm:$0x3]
        %v671 = vsel %vm429, %v669, 0
        %673 = vmatpush.bf16.msra.mxu0 0
        %674 = vmatpush.bf16.msra.mxu0 0
        %675 = vmatpush.bf16.msra.mxu0 0
        %676 = vmatpush.bf16.msra.mxu0 0
        %677 = vmatpush.bf16.msra.mxu0 0
        %678 = vmatpush.bf16.msra.mxu0 0
        %679 = vmatpush.bf16.msra.mxu0 0
        %680 = vmatpush.bf16.msra.mxu0 %v671
        %681 = vmatmul.bf16.gmra.mxu0 %v427
        %v682 = vpop.f32.mrf.mxu0
        %v683 = vadd.f32 %v668, %v682
        %v684 = vpop.f32.mrf.mxu0
        %685 = vdwg.mxu0
        %686 = vst.msk [vmem:[%s352] sm:$0xff] %vm535, %v683
        %s687 = sand.u32 %s247, 1
        %s688 = scalar_lea.sflag [#allocation3], %s687
        %s689 = sand.u32 %s247, 1
        %s690 = smul.addr %s689, 8
        %s691 = scalar_lea.vmem [#allocation2], %s690
        // Predicated region
        $region61: #{tpu_custom_call.1} parent=59 // pred_check
          %p692 = pneg %p257
        $region62: #{tpu_custom_call.1} parent=59 // pred_check_branch
          %694 = sbr.rel (%p692) target = $region64
        $region63: #{tpu_custom_call.1} parent=59 // pred_region
          %696 = vsyncadd %s688, 0
          %s697 = smul.addr %s24, 8
          %s698 = scalar_lea.hbm %s10, %s697
          %s700 = sshll.u32 %s691, 4
          %s701 = int_to_ptr.vmem [resolvable:$true] %s700
          %s702 = sshll.u32 %s698, 4
          %s703 = int_to_ptr.hbm [resolvable:$true] %s702
          %705 = dma.vmem_to_hbm [thread:$0]  %s701, 128, %s703, %s688
        $region64: #{tpu_custom_call.1} parent=59 // pred_fallthru
          _
      $region60: #{tpu_custom_call.1} parent=5 // pred_fallthru
        _
      %p706 = scmp.le.s32.totalorder 2, %s19
      // Predicated region
      $region65: #{tpu_custom_call.1} parent=5 // pred_check
        %p707 = pneg %p706
      $region66: #{tpu_custom_call.1} parent=5 // pred_check_branch
        %709 = sbr.rel (%p707) target = $region68
      $region67: #{tpu_custom_call.1} parent=5 // pred_region
        %s710 = ssub.s32 %s19, 2
        // Predicated region
        $region69: #{tpu_custom_call.1} parent=67 // pred_check
          %p711 = pneg %p263
        $region70: #{tpu_custom_call.1} parent=67 // pred_check_branch
          %713 = sbr.rel (%p711) target = $region72
        $region71: #{tpu_custom_call.1} parent=67 // pred_region
          %s714 = sand.u32 %s248, 1
          %s715 = scalar_lea.sflag [#allocation3], %s714
          %s716 = sand.u32 %s248, 1
          %s717 = smul.addr %s716, 8
          %s718 = scalar_lea.vmem [#allocation2], %s717
          %720 = dma.done %s715, 128
        $region72: #{tpu_custom_call.1} parent=67 // pred_fallthru
          _
      $region68: #{tpu_custom_call.1} parent=5 // pred_fallthru
        _
    $region6: #{tpu_custom_call.1} parent=1 // loop_footer
      %s23 = sadd.s32 1, %s19
    $region7: #{tpu_custom_call.1} parent=1 // loop_footer_branch
      %18 = sbr.rel target = $region3
    $region8: #{tpu_custom_call.1} parent=1 // loop_exit
      _
    %721 = vsyncpa [#allocation3], 1
    %s722 = scalar_lea.sflag [#allocation3], 1
    %723 = vsyncpa %s722, 1

</llo_original>
